<compile_context>
chip_gen: v5e
topology: v5e:2x2
jax: 0.10.0
libtpu: 0.0.40
codegen_flags: <defaults>
</compile_context>

<pallas_src>
import jax
import jax.numpy as jnp
from jax.experimental import pallas as pl
from jax.experimental.pallas import tpu as pltpu

_LANE = 128
_NEG_BIG = -1e30  # padded-class bias -> exp() underflows to exactly 0


def _classifier_kernel(x_ref, w1_ref, b1_ref, w2_ref, b2_ref, o_ref):
    # fc1: bf16 MXU inputs, f32 accumulate; bias + ReLU in f32 (VPU)
    h = jnp.dot(x_ref[...], w1_ref[...], preferred_element_type=jnp.float32)
    h = jnp.maximum(h + b1_ref[...], 0.0)

    # fc2: cast hidden activations to bf16 for the MXU, keep f32 accumulator
    logits = jnp.dot(h.astype(jnp.bfloat16), w2_ref[...],
                     preferred_element_type=jnp.float32)
    logits = logits + b2_ref[...]  # padded classes get -1e30 here

    # numerically stable softmax over the lane-dense (padded-to-128) class axis
    m = jnp.max(logits, axis=-1, keepdims=True)
    e = jnp.exp(logits - m)
    denom = jnp.sum(e, axis=-1, keepdims=True)
    o_ref[...] = (e * pl.reciprocal(denom, approx=True)).astype(o_ref.dtype)


def classifier_forward(x, w1, b1, w2, b2, *, batch_tile: int = 512):
    """x: [B, D_in]; w1: [D_in, H]; b1: [H]; w2: [H, C]; b2: [C] -> probs [B, C]."""
    batch, d_in = x.shape
    hidden = w1.shape[1]
    out_size = w2.shape[1]

    # ---- pad the class axis to a multiple of 128 lanes -----------------------
    out_pad = pl.cdiv(out_size, _LANE) * _LANE
    w2p = jnp.zeros((hidden, out_pad), jnp.float32).at[:, :out_size].set(
        w2.astype(jnp.float32))
    b2p = jnp.full((1, out_pad), _NEG_BIG, jnp.float32).at[:, :out_size].set(
        b2.reshape(1, -1).astype(jnp.float32))

    # ---- batch tiling (TB multiple of 8, capped) -----------------------------
    tb = min(batch_tile, max(8, pl.cdiv(batch, 8) * 8))
    b_pad = pl.cdiv(batch, tb) * tb
    xp = x
    if b_pad != batch:
        xp = jnp.zeros((b_pad, d_in), x.dtype).at[:batch].set(x)

    # ---- bf16 MXU inputs (converted once, outside the grid loop) -------------
    xp_bf = xp.astype(jnp.bfloat16)
    w1_bf = w1.astype(jnp.bfloat16)
    w2_bf = w2p.astype(jnp.bfloat16)
    b1_f32 = b1.reshape(1, -1).astype(jnp.float32)

    grid = (b_pad // tb,)
    out = pl.pallas_call(
        _classifier_kernel,
        out_shape=jax.ShapeDtypeStruct((b_pad, out_pad), jnp.float32),
        grid_spec=pltpu.PrefetchScalarGridSpec(
            num_scalar_prefetch=0,
            grid=grid,
            in_specs=[
                pl.BlockSpec((tb, d_in), lambda i: (i, 0)),        # x tile
                pl.BlockSpec((d_in, hidden), lambda i: (0, 0)),    # W1 resident
                pl.BlockSpec((1, hidden), lambda i: (0, 0)),       # b1 resident
                pl.BlockSpec((hidden, out_pad), lambda i: (0, 0)), # W2 resident
                pl.BlockSpec((1, out_pad), lambda i: (0, 0)),      # b2 resident
            ],
            out_specs=pl.BlockSpec((tb, out_pad), lambda i: (i, 0)),
        ),
        compiler_params=pltpu.CompilerParams(
            dimension_semantics=("parallel",)),
    )(xp_bf, w1_bf, b1_f32, w2_bf, b2p)

    return out[:batch, :out_size]


def init_classifier_params(key, input_size: int, output_size: int, hidden: int = 32):
    """Deterministic init mimicking torch.nn.Linear (U[-1/sqrt(fan_in), 1/sqrt(fan_in)])."""
    k1, k2, k3, k4 = jax.random.split(key, 4)
    bound1 = 1.0 / jnp.sqrt(input_size)
    bound2 = 1.0 / jnp.sqrt(hidden)
    w1 = jax.random.uniform(k1, (input_size, hidden), jnp.float32, -bound1, bound1)
    b1 = jax.random.uniform(k2, (hidden,), jnp.float32, -bound1, bound1)
    w2 = jax.random.uniform(k3, (hidden, output_size), jnp.float32, -bound2, bound2)
    b2 = jax.random.uniform(k4, (output_size,), jnp.float32, -bound2, bound2)
    return w1, b1, w2, b2


def _reference_forward(x, w1, b1, w2, b2):
    """Pure-JAX reference mirroring the kernel's bf16 MXU inputs / f32 accumulate."""
    xb = x.astype(jnp.bfloat16).astype(jnp.float32)
    w1b = w1.astype(jnp.bfloat16).astype(jnp.float32)
    w2b = w2.astype(jnp.bfloat16).astype(jnp.float32)
    h = jnp.maximum(xb @ w1b + b1.reshape(1, -1), 0.0)
    hb = h.astype(jnp.bfloat16).astype(jnp.float32)
    logits = hb @ w2b + b2.reshape(1, -1)
    return jax.nn.softmax(logits, axis=-1)


if __name__ == "__main__":
    input_size = 64
    output_size = 2
    batch_size = 2

    key = jax.random.PRNGKey(0)
    k_params, k_x = jax.random.split(key)

    w1, b1, w2, b2 = init_classifier_params(k_params, input_size, output_size)
    x = jax.random.normal(k_x, (batch_size, input_size), dtype=jnp.float32)

    probs = classifier_forward(x, w1, b1, w2, b2)
    probs = jax.block_until_ready(probs)

    ref = _reference_forward(x, w1, b1, w2, b2)

    assert probs.shape == (batch_size, output_size)
    assert jnp.allclose(probs, ref, atol=5e-3), "mismatch vs reference"
    assert jnp.allclose(jnp.sum(probs, axis=-1), 1.0, atol=5e-3)

    print("KERNEL_OK")
</pallas_src>

<mosaic_0001>
module attributes {stable_mosaic.version = 11 : i64} {
  func.func @_classifier_kernel(%arg0: i32, %arg1: memref<8x64xbf16, #tpu.memory_space<vmem>>, %arg2: memref<64x32xbf16, #tpu.memory_space<vmem>>, %arg3: memref<1x32xf32, #tpu.memory_space<vmem>>, %arg4: memref<32x128xbf16, #tpu.memory_space<vmem>>, %arg5: memref<1x128xf32, #tpu.memory_space<vmem>>, %arg6: memref<8x128xf32, #tpu.memory_space<vmem>>) attributes {dimension_semantics = [#tpu.dimension_semantics<parallel>], iteration_bounds = array<i64: 1>, scalar_prefetch = 0 : i64, scratch_operands = 0 : i64, tpu.core_type = #tpu.core_type<tc>, window_params = [{transform_indices = @transform_0, window_bounds = array<i64: 8, 64>}, {pipeline_mode = #tpu.pipeline_mode<synchronous>, transform_indices = @transform_1, window_bounds = array<i64: 64, 32>}, {pipeline_mode = #tpu.pipeline_mode<synchronous>, transform_indices = @transform_2, window_bounds = array<i64: 1, 32>}, {pipeline_mode = #tpu.pipeline_mode<synchronous>, transform_indices = @transform_3, window_bounds = array<i64: 32, 128>}, {pipeline_mode = #tpu.pipeline_mode<synchronous>, transform_indices = @transform_4, window_bounds = array<i64: 1, 128>}, {transform_indices = @transform_5, window_bounds = array<i64: 8, 128>}]} {
    %c0 = arith.constant 0 : index
    %c0_0 = arith.constant 0 : index
    %0 = vector.load %arg1[%c0, %c0_0] : memref<8x64xbf16, #tpu.memory_space<vmem>>, vector<8x64xbf16>
    %c0_1 = arith.constant 0 : index
    %c0_2 = arith.constant 0 : index
    %1 = vector.load %arg2[%c0_1, %c0_2] : memref<64x32xbf16, #tpu.memory_space<vmem>>, vector<64x32xbf16>
    %cst = arith.constant dense<0.000000e+00> : vector<8x32xf32>
    %2 = tpu.matmul %0, %1, %cst {dimension_numbers = #tpu.dot_dimension_numbers<[1], [0], [0], [1], [0, 0, 1, 1], [], []>} : vector<8x64xbf16>, vector<64x32xbf16>, vector<8x32xf32> -> vector<8x32xf32>
    %c0_3 = arith.constant 0 : index
    %c0_4 = arith.constant 0 : index
    %3 = vector.load %arg3[%c0_3, %c0_4] : memref<1x32xf32, #tpu.memory_space<vmem>>, vector<1x32xf32>
    %4 = vector.broadcast %3 : vector<1x32xf32> to vector<8x32xf32>
    %5 = arith.addf %2, %4 : vector<8x32xf32>
    %cst_5 = arith.constant 0.000000e+00 : f32
    %6 = vector.broadcast %cst_5 : f32 to vector<8x32xf32>
    %7 = arith.maximumf %5, %6 : vector<8x32xf32>
    %8 = arith.truncf %7 : vector<8x32xf32> to vector<8x32xbf16>
    %c0_6 = arith.constant 0 : index
    %c0_7 = arith.constant 0 : index
    %9 = vector.load %arg4[%c0_6, %c0_7] : memref<32x128xbf16, #tpu.memory_space<vmem>>, vector<32x128xbf16>
    %cst_8 = arith.constant dense<0.000000e+00> : vector<8x128xf32>
    %10 = tpu.matmul %8, %9, %cst_8 {dimension_numbers = #tpu.dot_dimension_numbers<[1], [0], [0], [1], [0, 0, 1, 1], [], []>} : vector<8x32xbf16>, vector<32x128xbf16>, vector<8x128xf32> -> vector<8x128xf32>
    %c0_9 = arith.constant 0 : index
    %c0_10 = arith.constant 0 : index
    %11 = vector.load %arg5[%c0_9, %c0_10] : memref<1x128xf32, #tpu.memory_space<vmem>>, vector<1x128xf32>
    %12 = vector.broadcast %11 : vector<1x128xf32> to vector<8x128xf32>
    %13 = arith.addf %10, %12 : vector<8x128xf32>
    %cst_11 = arith.constant dense<0xFF800000> : vector<8xf32>
    %14 = vector.multi_reduction <maximumf>, %13, %cst_11 [1] : vector<8x128xf32> to vector<8xf32>
    %15 = vector.shape_cast %14 : vector<8xf32> to vector<8x1xf32>
    %16 = vector.broadcast %15 : vector<8x1xf32> to vector<8x128xf32>
    %17 = arith.subf %13, %16 : vector<8x128xf32>
    %18 = math.exp %17 : vector<8x128xf32>
    %cst_12 = arith.constant dense<0.000000e+00> : vector<8xf32>
    %19 = vector.multi_reduction <add>, %18, %cst_12 [1] : vector<8x128xf32> to vector<8xf32>
    %20 = vector.shape_cast %19 : vector<8xf32> to vector<8x1xf32>
    %21 = tpu.reciprocal %20 {approx = true} : vector<8x1xf32> -> vector<8x1xf32>
    %22 = vector.broadcast %21 : vector<8x1xf32> to vector<8x128xf32>
    %23 = arith.mulf %18, %22 : vector<8x128xf32>
    %c0_13 = arith.constant 0 : index
    %c0_14 = arith.constant 0 : index
    %24 = vector.load %arg6[%c0_13, %c0_14] : memref<8x128xf32, #tpu.memory_space<vmem>>, vector<8x128xf32>
    tpu.vector_store %arg6[%c0_13, %c0_14], %23 {strides = array<i32>} : memref<8x128xf32, #tpu.memory_space<vmem>>, vector<8x128xf32>,
    return
  }
  func.func @transform_0(%arg0: i32) -> (i32, i32) {
    %c0_i32 = arith.constant 0 : i32
    %c0_i32_0 = arith.constant 0 : i32
    return %arg0, %c0_i32 : i32, i32
  }
  func.func @transform_1(%arg0: i32) -> (i32, i32) {
    %c0_i32 = arith.constant 0 : i32
    %c0_i32_0 = arith.constant 0 : i32
    %c0_i32_1 = arith.constant 0 : i32
    return %c0_i32, %c0_i32_0 : i32, i32
  }
  func.func @transform_2(%arg0: i32) -> (i32, i32) {
    %c0_i32 = arith.constant 0 : i32
    %c0_i32_0 = arith.constant 0 : i32
    %c0_i32_1 = arith.constant 0 : i32
    return %c0_i32, %c0_i32_0 : i32, i32
  }
  func.func @transform_3(%arg0: i32) -> (i32, i32) {
    %c0_i32 = arith.constant 0 : i32
    %c0_i32_0 = arith.constant 0 : i32
    %c0_i32_1 = arith.constant 0 : i32
    return %c0_i32, %c0_i32_0 : i32, i32
  }
  func.func @transform_4(%arg0: i32) -> (i32, i32) {
    %c0_i32 = arith.constant 0 : i32
    %c0_i32_0 = arith.constant 0 : i32
    %c0_i32_1 = arith.constant 0 : i32
    return %c0_i32, %c0_i32_0 : i32, i32
  }
  func.func @transform_5(%arg0: i32) -> (i32, i32) {
    %c0_i32 = arith.constant 0 : i32
    %c0_i32_0 = arith.constant 0 : i32
    return %arg0, %c0_i32 : i32, i32
  }
}

</mosaic_0001>

<llo_original>
// kernel: tpu_custom_call.1
$region0: #{tpu_custom_call.1}
  #allocation0 [shape = 'u32[]', space=smem, size = 0x4, offset = 0x4, fixed_abs, tag = 'smem constant byte address 0x4 - core index']
  #allocation1 [shape = 'u32[72,128]{1,0:T(1,128)}', space=vmem, size = 0x9000, scoped, tag = 'internal scratch']
  %s0 = inlined_call_operand.vmem [shape: bf16[8,64], index: 0, kind: input, shape index: {}]
  %s1 = inlined_call_operand.vmem [shape: bf16[64,32], index: 1, kind: input, shape index: {}]
  %s2 = inlined_call_operand.vmem [shape: f32[1,32], index: 2, kind: input, shape index: {}]
  %s3 = inlined_call_operand.vmem [shape: bf16[32,128], index: 3, kind: input, shape index: {}]
  %s4 = inlined_call_operand.vmem [shape: f32[1,128], index: 4, kind: input, shape index: {}]
  %s5 = inlined_call_operand.hbm [shape: f32[8,128], index: 5, kind: output, shape index: {}]
  %s6 = sld [smem:[#allocation0]]
  $region30: #{tpu_custom_call.1} parent=0
    _
  %s8 = ssub.s32 1, %s6
  %s9 = scalar_select 0, %s8, %s6
  $region1: #{tpu_custom_call.1} parent=0
    #allocation2 [shape = 'u8[4096]{0}', space=vmem, size = 0x1000, scoped, tag = 'output window, operand 0, single buffered']
    #allocation3 [shape = 's32[1]{0}', space=sflag, size = 0x4, scoped, tag = 'scoped memory for tpu_custom_call.1']
    %10 = vsyncpa [#allocation3], 0
    // Predicated region
    $region2: #{tpu_custom_call.1} parent=1 // pred_check
      _
    $region3: #{tpu_custom_call.1} parent=1 // pred_check_branch
      %12 = sbr.rel (0) target = $region5
    $region4: #{tpu_custom_call.1} parent=1 // pred_region
      _
    $region5: #{tpu_custom_call.1} parent=1 // pred_fallthru
      _
    // Predicated region
    $region6: #{tpu_custom_call.1} parent=1 // pred_check
      _
    $region7: #{tpu_custom_call.1} parent=1 // pred_check_branch
      %14 = sbr.rel (0) target = $region9
    $region8: #{tpu_custom_call.1} parent=1 // pred_region
      _
    $region9: #{tpu_custom_call.1} parent=1 // pred_fallthru
      _
    // Predicated region
    $region10: #{tpu_custom_call.1} parent=1 // pred_check
      _
    $region11: #{tpu_custom_call.1} parent=1 // pred_check_branch
      %16 = sbr.rel (0) target = $region13
    $region12: #{tpu_custom_call.1} parent=1 // pred_region
      _
    $region13: #{tpu_custom_call.1} parent=1 // pred_fallthru
      _
    // Predicated region
    $region14: #{tpu_custom_call.1} parent=1 // pred_check
      _
    $region15: #{tpu_custom_call.1} parent=1 // pred_check_branch
      %18 = sbr.rel (0) target = $region17
    $region16: #{tpu_custom_call.1} parent=1 // pred_region
      _
    $region17: #{tpu_custom_call.1} parent=1 // pred_fallthru
      _
    // Predicated region
    $region18: #{tpu_custom_call.1} parent=1 // pred_check
      _
    $region19: #{tpu_custom_call.1} parent=1 // pred_check_branch
      %20 = sbr.rel (0) target = $region21
    $region20: #{tpu_custom_call.1} parent=1 // pred_region
      _
    $region21: #{tpu_custom_call.1} parent=1 // pred_fallthru
      _
    %v22 = vld [vmem:[%s0] sm:$0xf]
    %v23 = vld [vmem:[%s1] sm:$0xf]
    %v24 = vld [vmem:[%s1 + $0x4] sm:$0xf]
    %v25 = vld [vmem:[%s1 + $0x8] sm:$0xf]
    %v26 = vld [vmem:[%s1 + $0xc] sm:$0xf]
    %v27 = vld [vmem:[%s1 + $0x10] sm:$0xf]
    %v28 = vld [vmem:[%s1 + $0x14] sm:$0xf]
    %v29 = vld [vmem:[%s1 + $0x18] sm:$0xf]
    %v30 = vld [vmem:[%s1 + $0x1c] sm:$0xf]
    %v31 = vld [vmem:[%s2] sm:$0x1]
    %v33 = vperm.slane %v31, 0
    %v43 = vunpack.c.l.b16 %v23
    %v44 = vunpack.c.l.b16 %v24
    %v45 = vunpack.c.l.b16 %v25
    %v46 = vunpack.c.l.b16 %v26
    %v47 = vunpack.c.l.b16 %v27
    %v48 = vunpack.c.l.b16 %v28
    %v49 = vunpack.c.l.b16 %v29
    %v50 = vunpack.c.l.b16 %v30
    %v51 = vpack.c.b16 %v44, %v43
    %v52 = vpack.c.b16 %v46, %v45
    %v53 = vpack.c.b16 %v48, %v47
    %v54 = vpack.c.b16 %v50, %v49
    %vm59 = vcmask 523264
    %v61 = vsel %vm59, %v22, 0
    %63 = vmatpush.bf16.msra.mxu0 0
    %64 = vmatpush.bf16.msra.mxu0 0
    %65 = vmatpush.bf16.msra.mxu0 0
    %66 = vmatpush.bf16.msra.mxu0 0
    %67 = vmatpush.bf16.msra.mxu0 %v54
    %68 = vmatpush.bf16.msra.mxu0 %v53
    %69 = vmatpush.bf16.msra.mxu0 %v52
    %70 = vmatpush.bf16.msra.mxu0 %v51
    %71 = vmatmul.bf16.gmra.mxu0 %v61
    %v72 = vpop.f32.mrf.mxu0
    %v73 = vadd.f32 %v33, %v72
    %v74 = vpop.f32.mrf.mxu0
    %75 = vdwg.mxu0
    %v76 = vmax.f32 %v73, 0.0
    %v77 = vpack.c.bf16 %v76, %v76
    %v78 = vld [vmem:[%s3] sm:$0xf]
    %v79 = vld [vmem:[%s3 + $0x4] sm:$0xf]
    %v80 = vld [vmem:[%s3 + $0x8] sm:$0xf]
    %v81 = vld [vmem:[%s3 + $0xc] sm:$0xf]
    %v82 = vld [vmem:[%s4] sm:$0x1]
    %v84 = vperm.slane %v82, 0
    %v90 = vunpack.c.l.b16 %v78
    %v91 = vunpack.c.l.b16 %v79
    %v92 = vunpack.c.l.b16 %v80
    %v93 = vunpack.c.l.b16 %v81
    %v94 = vpack.c.b16 %v91, %v90
    %v95 = vpack.c.b16 %v93, %v92
    %vm98 = vcmask 261120
    %v100 = vsel %vm98, %v77, 0
    %102 = vmatpush.bf16.msra.mxu0 0
    %103 = vmatpush.bf16.msra.mxu0 0
    %104 = vmatpush.bf16.msra.mxu0 0
    %105 = vmatpush.bf16.msra.mxu0 0
    %106 = vmatpush.bf16.msra.mxu0 0
    %107 = vmatpush.bf16.msra.mxu0 0
    %108 = vmatpush.bf16.msra.mxu0 %v95
    %109 = vmatpush.bf16.msra.mxu0 %v94
    %110 = vmatmul.bf16.gmra.mxu0 %v100
    %v111 = vpop.f32.mrf.mxu0
    %v112 = vadd.f32 %v84, %v111
    %v113 = vpop.f32.mrf.mxu0
    %114 = vdwg.mxu0
    %115 = vmax.xlane.f32.xlu0 %v112
    %v116 = vpop.xlane.xlu0 %115
    %v117 = vsub.f32 %v112, %v116
    %v118 = vmul.f32 %v117, 1.442695
    %v119 = vpow.pop %v118
    %120 = vadd.xlane.f32.xlu0 %v119
    %v121 = vpop.xlane.xlu0 %120
    %v122 = vrcp.pop %v121
    %v123 = vmul.f32 %v119, %v122
    %124 = vst [vmem:[#allocation2] sm:$0xff] %v123
    // Predicated region
    $region22: #{tpu_custom_call.1} parent=1 // pred_check
      _
    $region23: #{tpu_custom_call.1} parent=1 // pred_check_branch
      %126 = sbr.rel (0) target = $region25
    $region24: #{tpu_custom_call.1} parent=1 // pred_region
      %128 = vsyncadd [#allocation3], 0
      %s130 = sshll.u32 [#allocation2], 4
      %s131 = int_to_ptr.vmem [resolvable:$true] %s130
      %s132 = sshll.u32 %s5, 4
      %s133 = int_to_ptr.hbm [resolvable:$true] %s132
      %135 = dma.vmem_to_hbm [thread:$0]  %s131, 128, %s133, [#allocation3]
    $region25: #{tpu_custom_call.1} parent=1 // pred_fallthru
      _
    // Predicated region
    $region26: #{tpu_custom_call.1} parent=1 // pred_check
      _
    $region27: #{tpu_custom_call.1} parent=1 // pred_check_branch
      %137 = sbr.rel (0) target = $region29
    $region28: #{tpu_custom_call.1} parent=1 // pred_region
      %139 = dma.done [#allocation3], 128
    $region29: #{tpu_custom_call.1} parent=1 // pred_fallthru
      _
    %140 = vsyncpa [#allocation3], 1

</llo_original>
